<compile_context>
chip_gen: v6e
topology: v6e:2x2x1
jax: 0.10.0
libtpu: 0.0.40
codegen_flags: <defaults>
</compile_context>

<pallas_src>
import jax
import jax.numpy as jnp
from jax.experimental import pallas as pl
from jax.experimental.pallas import tpu as pltpu

_LANE = 1024        # lane-dense width: large multiple of 128
_TILE_ROWS = 512    # 512 x 1024 f32 = 2 MiB per tile (safe on v5e/v6e/v7x)


def _inverse_kernel(x_ref, o_ref):
    # Elementwise VPU op on the resident VMEM tile; keep math in the input dtype.
    x = x_ref[...]
    o_ref[...] = jnp.asarray(1, x.dtype) - x


def inverse(x: jax.Array) -> jax.Array:
    """Computes 1.0 - x (torch `Inverse.forward` semantics)."""
    # Match torch promotion: 1.0 - integer tensor -> float tensor.
    if not jnp.issubdtype(x.dtype, jnp.floating):
        x = x.astype(jnp.float32)

    orig_shape = x.shape
    out_dtype = x.dtype
    total = x.size
    if total == 0:
        return x

    flat = x.reshape(-1)

    # Pad flattened length up to a multiple of the lane width.
    rows = pl.cdiv(total, _LANE)
    padded = rows * _LANE
    if padded != total:
        flat = jnp.pad(flat, (0, padded - total))

    # Choose block rows: full-array block for small inputs, fixed 512-row tiles
    # (divisible by 8) otherwise, padding rows to a multiple of the tile.
    if rows <= _TILE_ROWS:
        block_rows = rows
        grid_rows = 1
    else:
        block_rows = _TILE_ROWS
        grid_rows = pl.cdiv(rows, _TILE_ROWS)
        padded_rows = grid_rows * _TILE_ROWS
        if padded_rows != rows:
            flat = jnp.pad(flat, (0, (padded_rows - rows) * _LANE))
            rows = padded_rows

    x2d = flat.reshape(rows, _LANE)

    out2d = pl.pallas_call(
        _inverse_kernel,
        out_shape=jax.ShapeDtypeStruct((rows, _LANE), out_dtype),
        grid=(grid_rows,),
        in_specs=[pl.BlockSpec((block_rows, _LANE), lambda i: (i, 0))],
        out_specs=pl.BlockSpec((block_rows, _LANE), lambda i: (i, 0)),
        compiler_params=pltpu.CompilerParams(
            dimension_semantics=("parallel",),
        ),
    )(x2d)

    return out2d.reshape(-1)[:total].reshape(orig_shape)


if __name__ == "__main__":
    key = jax.random.PRNGKey(0)

    # Primary test: small NCHW f32 tensor, consistent with the module usage.
    x = jax.random.normal(key, (2, 4, 16, 16), dtype=jnp.float32)
    y = inverse(x)
    jax.block_until_ready(y)
    ref = 1.0 - x
    assert y.shape == x.shape and y.dtype == x.dtype
    assert jnp.allclose(y, ref, atol=0.0, rtol=0.0)

    # Ragged-tail path (total not a multiple of 1024) + bf16 dtype preservation.
    k2 = jax.random.PRNGKey(1)
    xb = jax.random.normal(k2, (3, 5, 7, 11), dtype=jnp.bfloat16)
    yb = inverse(xb)
    jax.block_until_ready(yb)
    refb = (jnp.asarray(1, jnp.bfloat16) - xb)
    assert yb.shape == xb.shape and yb.dtype == xb.dtype
    assert jnp.allclose(yb.astype(jnp.float32), refb.astype(jnp.float32),
                        atol=0.0, rtol=0.0)

    print("KERNEL_OK")
</pallas_src>

<mosaic_0001>
module attributes {stable_mosaic.version = 11 : i64} {
  func.func @_inverse_kernel(%arg0: i32, %arg1: memref<2x1024xf32, #tpu.memory_space<vmem>>, %arg2: memref<2x1024xf32, #tpu.memory_space<vmem>>) attributes {dimension_semantics = [#tpu.dimension_semantics<parallel>], iteration_bounds = array<i64: 1>, scalar_prefetch = 0 : i64, scratch_operands = 0 : i64, tpu.core_type = #tpu.core_type<tc>, window_params = [{transform_indices = @transform_0, window_bounds = array<i64: 2, 1024>}, {transform_indices = @transform_1, window_bounds = array<i64: 2, 1024>}]} {
    %c0 = arith.constant 0 : index
    %c0_0 = arith.constant 0 : index
    %0 = vector.load %arg1[%c0, %c0_0] : memref<2x1024xf32, #tpu.memory_space<vmem>>, vector<2x1024xf32>
    %cst = arith.constant 1.000000e+00 : f32
    %1 = vector.broadcast %cst : f32 to vector<2x1024xf32>
    %2 = arith.subf %1, %0 : vector<2x1024xf32>
    %c0_1 = arith.constant 0 : index
    %c0_2 = arith.constant 0 : index
    %3 = vector.load %arg2[%c0_1, %c0_2] : memref<2x1024xf32, #tpu.memory_space<vmem>>, vector<2x1024xf32>
    tpu.vector_store %arg2[%c0_1, %c0_2], %2 {strides = array<i32>} : memref<2x1024xf32, #tpu.memory_space<vmem>>, vector<2x1024xf32>,
    return
  }
  func.func @transform_0(%arg0: i32) -> (i32, i32) {
    %c0_i32 = arith.constant 0 : i32
    %c0_i32_0 = arith.constant 0 : i32
    return %arg0, %c0_i32 : i32, i32
  }
  func.func @transform_1(%arg0: i32) -> (i32, i32) {
    %c0_i32 = arith.constant 0 : i32
    %c0_i32_0 = arith.constant 0 : i32
    return %arg0, %c0_i32 : i32, i32
  }
}

</mosaic_0001>

<llo_original>
// kernel: tpu_custom_call.1
$region0: #{tpu_custom_call.1}
  #allocation0 [shape = 'u32[]', space=smem, size = 0x4, offset = 0x4, fixed_abs, tag = 'smem constant byte address 0x4 - core index']
  #allocation1 [shape = 'u32[144,128]{1,0:T(1,128)}', space=vmem, size = 0x12000, scoped, tag = 'internal scratch']
  %s0 = inlined_call_operand.hbm [shape: f32[2,1024], index: 0, kind: input, shape index: {}]
  %s1 = inlined_call_operand.hbm [shape: f32[2,1024], index: 1, kind: output, shape index: {}]
  %s2 = sld [smem:[#allocation0]]
  $region18: #{tpu_custom_call.1} parent=0
    _
  %s4 = ssub.s32 1, %s2
  %s5 = scalar_select 0, %s4, %s2
  $region1: #{tpu_custom_call.1} parent=0
    #allocation2 [shape = 'u8[8192]{0}', space=vmem, size = 0x2000, scoped, tag = 'input window, operand 0, single buffered']
    #allocation3 [shape = 's32[1]{0}', space=sflag, size = 0x4, scoped, tag = 'scoped memory for tpu_custom_call.1']
    #allocation4 [shape = 's32[1]{0}', space=sflag, size = 0x4, scoped, tag = 'scoped memory for tpu_custom_call.1']
    #allocation5 [shape = 'u8[8192]{0}', space=vmem, size = 0x2000, scoped, tag = 'output window, operand 0, single buffered']
    %6 = vsyncpa [#allocation3], 0
    %7 = vsyncpa [#allocation4], 0
    // Predicated region
    $region2: #{tpu_custom_call.1} parent=1 // pred_check
      _
    $region3: #{tpu_custom_call.1} parent=1 // pred_check_branch
      %9 = sbr.rel (0) target = $region5
    $region4: #{tpu_custom_call.1} parent=1 // pred_region
      %s11 = ssub.s32 256, 256
      %12 = vsyncadd [#allocation3], %s11
      %s14 = sshll.u32 [#allocation2], 4
      %s15 = int_to_ptr.vmem [resolvable:$true] %s14
      %17 = dma.hbm_to_vmem [thread:$0]  %s0, 256, %s15, [#allocation3]
    $region5: #{tpu_custom_call.1} parent=1 // pred_fallthru
      _
    // Predicated region
    $region6: #{tpu_custom_call.1} parent=1 // pred_check
      _
    $region7: #{tpu_custom_call.1} parent=1 // pred_check_branch
      %19 = sbr.rel (0) target = $region9
    $region8: #{tpu_custom_call.1} parent=1 // pred_region
      %20 = dma.done [#allocation3], 256
    $region9: #{tpu_custom_call.1} parent=1 // pred_fallthru
      _
    %v21 = vld [vmem:[#allocation2] sm:$0xff]
    %v22 = vld [vmem:[#allocation2 + $0x8] sm:$0xff]
    %v23 = vsub.f32 1.0, %v21
    %v24 = vsub.f32 1.0, %v22
    %25 = vst [vmem:[#allocation5] sm:$0xff] %v23
    %26 = vst [vmem:[#allocation5 + $0x8] sm:$0xff] %v24
    // Predicated region
    $region10: #{tpu_custom_call.1} parent=1 // pred_check
      _
    $region11: #{tpu_custom_call.1} parent=1 // pred_check_branch
      %28 = sbr.rel (0) target = $region13
    $region12: #{tpu_custom_call.1} parent=1 // pred_region
      %s30 = ssub.s32 256, 256
      %31 = vsyncadd [#allocation4], %s30
      %s33 = sshll.u32 [#allocation5], 4
      %s34 = int_to_ptr.vmem [resolvable:$true] %s33
      %36 = dma.vmem_to_hbm [thread:$0]  %s34, 256, %s1, [#allocation4]
    $region13: #{tpu_custom_call.1} parent=1 // pred_fallthru
      _
    // Predicated region
    $region14: #{tpu_custom_call.1} parent=1 // pred_check
      _
    $region15: #{tpu_custom_call.1} parent=1 // pred_check_branch
      %38 = sbr.rel (0) target = $region17
    $region16: #{tpu_custom_call.1} parent=1 // pred_region
      %39 = dma.done [#allocation4], 256
    $region17: #{tpu_custom_call.1} parent=1 // pred_fallthru
      _
    %40 = vsyncpa [#allocation3], 1
    %41 = vsyncpa [#allocation4], 1

</llo_original>
